<compile_context>
chip_gen: v5e
topology: v5e:2x2
jax: 0.10.0
libtpu: 0.0.40
codegen_flags: <defaults>
</compile_context>

<pallas_src>
import math
import jax
import jax.numpy as jnp
from jax.experimental import pallas as pl
from jax.experimental.pallas import tpu as pltpu


def _triple(v):
    if isinstance(v, (tuple, list)):
        assert len(v) == 3
        return tuple(int(x) for x in v)
    return (int(v),) * 3


def _round_up(v, m):
    return ((v + m - 1) // m) * m


def _vmem_capacity_bytes():
    try:
        info = pltpu.get_tpu_info()
        cap = getattr(info, "vmem_capacity_bytes", None)
        if cap:
            return int(cap)
    except Exception:
        pass
    return 64 * 1024 * 1024  # conservative (v7x per-TC)


# ---------------------------------------------------------------------------
# Pallas kernels: lane-dense  W^T @ X  (optionally fused bias column).
# ---------------------------------------------------------------------------
def _make_single_kernel(has_bias):
    if has_bias:
        def kernel(w_ref, x_ref, b_ref, o_ref):
            acc = jnp.dot(w_ref[...], x_ref[...],
                          preferred_element_type=jnp.float32)
            o_ref[...] = (acc + b_ref[...]).astype(o_ref.dtype)
    else:
        def kernel(w_ref, x_ref, o_ref):
            acc = jnp.dot(w_ref[...], x_ref[...],
                          preferred_element_type=jnp.float32)
            o_ref[...] = acc.astype(o_ref.dtype)
    return kernel


def _make_reduction_kernel(has_bias, use_scratch):
    # Cin split over the innermost ("arbitrary") grid axis (index 3).
    # When the output dtype is f32 we accumulate directly into o_ref (it is
    # resident across the k axis); otherwise into an f32 VMEM scratch.
    def impl(w_ref, x_ref, b_ref, o_ref, acc_ref):
        k = pl.program_id(3)
        tgt = acc_ref if use_scratch else o_ref

        @pl.when(k == 0)
        def _():
            tgt[...] = jnp.zeros_like(tgt)

        tgt[...] += jnp.dot(w_ref[...], x_ref[...],
                            preferred_element_type=jnp.float32)

        if use_scratch or has_bias:
            @pl.when(k == pl.num_programs(3) - 1)
            def _():
                res = tgt[...]
                if has_bias:
                    res = res + b_ref[...]
                o_ref[...] = res.astype(o_ref.dtype)

    if use_scratch and has_bias:
        def kernel(w, x, b, o, acc):
            impl(w, x, b, o, acc)
    elif use_scratch:
        def kernel(w, x, o, acc):
            impl(w, x, None, o, acc)
    elif has_bias:
        def kernel(w, x, b, o):
            impl(w, x, b, o, None)
    else:
        def kernel(w, x, o):
            impl(w, x, None, o, None)
    return kernel


def _pallas_convt_matmul(wT, x3, bias_col, out_dtype):
    """Y[n] = wT @ x3[n] (+ bias_col), lane-dense over the spatial axis.

    wT: (Nc, Cin), x3: (N, Cin, S), bias_col: (Nc, 1) f32 or None.
    Returns (N, Nc, S) in out_dtype.
    """
    Nc, Cin = wT.shape
    N, Cin2, S = x3.shape
    assert Cin == Cin2
    has_bias = bias_col is not None

    in_isz = jnp.dtype(wT.dtype).itemsize
    out_isz = jnp.dtype(out_dtype).itemsize
    vmem_cap = _vmem_capacity_bytes()
    big_vmem = vmem_cap >= (96 << 20)          # v5e/v6e (128 MiB) vs v7x (64 MiB)
    tk_max = 1024 if big_vmem else 512

    # ---- Cin (reduction) tile: never ragged; pad Cin to a 128 multiple if
    # needed so tk stays bounded (no VMEM blow-up for awkward Cin). -----------
    if Cin <= tk_max:
        tk = Cin
    else:
        cin_p = _round_up(Cin, 128)
        tk = next(c for c in (1024, 512, 384, 256, 128)
                  if c <= tk_max and cin_p % c == 0)
        if cin_p != Cin:
            wT = jnp.pad(wT, ((0, 0), (0, cin_p - Cin)))
            x3 = jnp.pad(x3, ((0, 0), (0, cin_p - Cin), (0, 0)))
            Cin = cin_p
    k_tiles = Cin // tk

    # ---- Cout*K tile (sublane axis of weight/output blocks). ----------------
    tn = min(512, _round_up(Nc, 8))
    nc_tiles = pl.cdiv(Nc, tn)

    use_scratch = (k_tiles > 1) and (jnp.dtype(out_dtype) != jnp.dtype(jnp.float32))

    # ---- Spatial tile: as large as the VMEM budget allows (amortize the
    # ~0.35us per-grid-step overhead when channels are small). ----------------
    budget = min(int(vmem_cap * 0.45), 56 << 20)
    fixed = 2 * tn * tk * in_isz + (2 * tn * 4 if has_bias else 0)
    per_tm = (2 * tk * in_isz            # X block (double buffered)
              + 2 * tn * out_isz         # out block (double buffered)
              + (tn * 4 if use_scratch else 0))
    tm_cap = max(128, ((budget - fixed) // per_tm) // 128 * 128)
    hard_cap = 8192 if big_vmem else 4096
    tm = int(max(128, min(hard_cap, tm_cap, _round_up(S, 128))))

    # ---- Guarantee >= 2 parallel grid tiles when possible (v7x megacore). ---
    while N * nc_tiles * pl.cdiv(S, tm) < 2 and tm > 128:
        tm = max(128, (tm // 2) // 128 * 128)
    m_tiles = pl.cdiv(S, tm)

    # ---- Specs / kernel selection. -------------------------------------------
    if k_tiles == 1:
        in_specs = [
            pl.BlockSpec((tn, tk), lambda n, j, i: (j, 0)),           # W^T tile
            pl.BlockSpec((None, tk, tm), lambda n, j, i: (n, 0, i)),  # X tile
        ]
        if has_bias:
            in_specs.append(pl.BlockSpec((tn, 1), lambda n, j, i: (j, 0)))
        out_spec = pl.BlockSpec((None, tn, tm), lambda n, j, i: (n, j, i))
        grid = (N, nc_tiles, m_tiles)
        dims = ("parallel", "parallel", "parallel")
        kernel = _make_single_kernel(has_bias)
        scratch = []
    else:
        in_specs = [
            pl.BlockSpec((tn, tk), lambda n, j, i, k: (j, k)),
            pl.BlockSpec((None, tk, tm), lambda n, j, i, k: (n, k, i)),
        ]
        if has_bias:
            in_specs.append(pl.BlockSpec((tn, 1), lambda n, j, i, k: (j, 0)))
        out_spec = pl.BlockSpec((None, tn, tm), lambda n, j, i, k: (n, j, i))
        grid = (N, nc_tiles, m_tiles, k_tiles)
        dims = ("parallel", "parallel", "parallel", "arbitrary")
        kernel = _make_reduction_kernel(has_bias, use_scratch)
        scratch = [pltpu.VMEM((tn, tm), jnp.float32)] if use_scratch else []

    working = (2 * tn * tk * in_isz + 2 * tk * tm * in_isz
               + 2 * tn * tm * out_isz
               + (tn * tm * 4 if use_scratch else 0)
               + (2 * tn * 4 if has_bias else 0))
    vmem_limit = int(min(vmem_cap - (2 << 20),
                         max(32 << 20, working + (8 << 20))))

    args = (wT, x3, bias_col) if has_bias else (wT, x3)
    return pl.pallas_call(
        kernel,
        out_shape=jax.ShapeDtypeStruct((N, Nc, S), out_dtype),
        grid_spec=pltpu.PrefetchScalarGridSpec(
            num_scalar_prefetch=0,
            grid=grid,
            in_specs=in_specs,
            out_specs=out_spec,
            scratch_shapes=scratch),
        compiler_params=pltpu.CompilerParams(
            dimension_semantics=dims,
            vmem_limit_bytes=vmem_limit),
    )(*args)


# ---------------------------------------------------------------------------
# XLA transposed conv (lhs-dilated conv) — used for the overlapping-stride
# fallback and as an independent reference in the tests.
# ---------------------------------------------------------------------------
def _xla_conv_transpose3d(x, weight, bias, stride, padding):
    sd, sh, sw = stride
    pd, ph, pw = padding
    Cin, Cout, kD, kH, kW = weight.shape
    w_flip = weight[:, :, ::-1, ::-1, ::-1]
    w_oidhw = jnp.transpose(w_flip, (1, 0, 2, 3, 4)).astype(x.dtype)
    pads = ((kD - 1 - pd, kD - 1 - pd),
            (kH - 1 - ph, kH - 1 - ph),
            (kW - 1 - pw, kW - 1 - pw))
    out = jax.lax.conv_general_dilated(
        x, w_oidhw, window_strides=(1, 1, 1), padding=pads,
        lhs_dilation=(sd, sh, sw), rhs_dilation=(1, 1, 1),
        dimension_numbers=("NCDHW", "OIDHW", "NCDHW"),
        precision=jax.lax.Precision.HIGHEST)
    if bias is not None:
        out = out + bias.astype(out.dtype)[None, :, None, None, None]
    return out


# ---------------------------------------------------------------------------
# ConvTranspose3d forward built on the Pallas matmul.
# ---------------------------------------------------------------------------
def conv_transpose3d(x, weight, bias, stride, padding, compute_dtype=None,
                     out_dtype=None):
    N, Cin, D, H, W = x.shape
    Cin_w, Cout, kD, kH, kW = weight.shape
    assert Cin == Cin_w
    sd, sh, sw = stride
    pd, ph, pw = padding

    if out_dtype is None:
        out_dtype = x.dtype
    if compute_dtype is None:
        compute_dtype = x.dtype

    nonoverlap = (sd, sh, sw) == (kD, kH, kW) and (pd, ph, pw) == (0, 0, 0)
    if not nonoverlap:
        # TODO(synk): fuse a Pallas col2im kernel for overlapping taps; use the
        # single XLA lhs-dilated conv instead of the previous k^3 scatter-add.
        return _xla_conv_transpose3d(x, weight, bias, stride, padding
                                     ).astype(out_dtype)

    K = kD * kH * kW
    S = D * H * W
    Nc = Cout * K

    # Natural, transpose-free view of the activation (pure reshape, no copy
    # when x is already in compute_dtype).
    x3 = x.reshape(N, Cin, S).astype(compute_dtype)
    # (Cout*K, Cin) weight; row index = cout*K + tap (one-time, tiny transpose).
    wT = jnp.transpose(weight, (1, 2, 3, 4, 0)).reshape(Nc, Cin).astype(compute_dtype)

    bias_col = None
    if bias is not None:
        # Exactly one tap per output voxel (k == stride) -> fuse bias in-kernel.
        bias_col = jnp.repeat(bias.astype(jnp.float32), K)[:, None]

    y = _pallas_convt_matmul(wT, x3, bias_col, out_dtype)     # (N, Cout*K, S)
    y = y.reshape(N, Cout, kD, kH, kW, D, H, W)
    # For k=1 (module default) this permute is a pure reshape (no data motion);
    # for k>1 it moves out_dtype bytes (half of f32 when bf16).
    out = jnp.transpose(y, (0, 1, 5, 2, 6, 3, 7, 4))
    return out.reshape(N, Cout, D * kD, H * kH, W * kW)


# ---------------------------------------------------------------------------
# ConvT module analogue (deterministic MSRA / kaiming_normal_ init).
# ---------------------------------------------------------------------------
class ConvT:
    """3D convolution transpose w/ MSRA init (JAX / Pallas version)."""

    def __init__(self, in_channels, out_channels, kernel_size=1, stride=1,
                 padding=0, bias=True, key=None, compute_dtype=None):
        if key is None:
            key = jax.random.PRNGKey(0)
        self.kernel_size = _triple(kernel_size)
        self.stride = _triple(stride)
        self.padding = _triple(padding)
        self.compute_dtype = compute_dtype
        kD, kH, kW = self.kernel_size
        # nn.init.kaiming_normal_ defaults (a=0, fan_in, leaky_relu); for a
        # ConvTranspose3d weight (Cin, Cout, kD, kH, kW): fan_in = Cout*kD*kH*kW.
        fan_in = out_channels * kD * kH * kW
        std = math.sqrt(2.0 / fan_in)
        wkey, _ = jax.random.split(key)
        self.weight = std * jax.random.normal(
            wkey, (in_channels, out_channels, kD, kH, kW), dtype=jnp.float32)
        self.bias = jnp.zeros((out_channels,), jnp.float32) if bias else None

    def __call__(self, x):
        return conv_transpose3d(x, self.weight, self.bias, self.stride,
                                self.padding, compute_dtype=self.compute_dtype)


# ---------------------------------------------------------------------------
# Independent pure-JAX/XLA reference.
# ---------------------------------------------------------------------------
def _reference_conv_transpose3d(x, weight, bias, stride, padding):
    return _xla_conv_transpose3d(x.astype(jnp.float32),
                                 weight.astype(jnp.float32),
                                 None if bias is None else bias.astype(jnp.float32),
                                 stride, padding)


if __name__ == "__main__":
    key = jax.random.PRNGKey(0)
    k1, k2, k3, k4, k5, kb2, kx1, kx2, kx3 = jax.random.split(key, 9)

    N, Cin, Cout = 2, 4, 8
    D, H, W = 4, 8, 8
    x = jax.random.normal(kx1, (N, Cin, D, H, W), dtype=jnp.float32)

    # --- Test 1: module defaults (kernel=1, stride=1, padding=0), f32. --------
    mod = ConvT(Cin, Cout, kernel_size=1, stride=1, padding=0, bias=True, key=k1)
    out = jax.block_until_ready(mod(x))
    ref = _reference_conv_transpose3d(x, mod.weight, mod.bias,
                                      mod.stride, mod.padding)
    assert out.shape == (N, Cout, D, H, W), out.shape
    assert out.dtype == x.dtype, out.dtype
    assert jnp.allclose(out, ref, atol=1e-4, rtol=1e-4), float(
        jnp.max(jnp.abs(out - ref)))

    # --- Test 2: non-overlapping upsample (kernel == stride), nonzero bias. ---
    mod2 = ConvT(Cin, Cout, kernel_size=(1, 2, 2), stride=(1, 2, 2), padding=0,
                 bias=True, key=k2)
    mod2.bias = 0.5 * jax.random.normal(kb2, (Cout,), dtype=jnp.float32)
    out2 = jax.block_until_ready(mod2(x))
    ref2 = _reference_conv_transpose3d(x, mod2.weight, mod2.bias,
                                       mod2.stride, mod2.padding)
    assert out2.shape == (N, Cout, D, 2 * H, 2 * W), out2.shape
    assert jnp.allclose(out2, ref2, atol=1e-4, rtol=1e-4), float(
        jnp.max(jnp.abs(out2 - ref2)))

    # --- Test 3: bf16 activations, bias=False -> bf16 compute & bf16 output. --
    xb = x.astype(jnp.bfloat16)
    mod3 = ConvT(Cin, Cout, kernel_size=(1, 2, 2), stride=(1, 2, 2), padding=0,
                 bias=False, key=k2)
    out3 = jax.block_until_ready(mod3(xb))
    assert out3.dtype == jnp.bfloat16, out3.dtype
    ref3 = _reference_conv_transpose3d(xb.astype(jnp.float32), mod3.weight, None,
                                       mod3.stride, mod3.padding)
    diff3 = jnp.max(jnp.abs(out3.astype(jnp.float32) - ref3))
    assert jnp.allclose(out3.astype(jnp.float32), ref3, atol=5e-2, rtol=5e-2), \
        float(diff3)

    # --- Test 4: large, awkward Cin -> Cin zero-pad + reduction grid axis. ----
    CinL = 1300
    xl = jax.random.normal(kx3, (1, CinL, 2, 4, 4), dtype=jnp.float32)
    mod4 = ConvT(CinL, Cout, kernel_size=1, stride=1, padding=0, bias=True,
                 key=k4)
    mod4.bias = 0.25 * jnp.arange(Cout, dtype=jnp.float32)
    out4 = jax.block_until_ready(mod4(xl))
    ref4 = _reference_conv_transpose3d(xl, mod4.weight, mod4.bias,
                                       mod4.stride, mod4.padding)
    assert out4.shape == ref4.shape, (out4.shape, ref4.shape)
    assert jnp.allclose(out4, ref4, atol=2e-2, rtol=1e-3), float(
        jnp.max(jnp.abs(out4 - ref4)))

    # --- Test 5: overlapping taps (kernel=3, stride=2, padding=1) fallback. ---
    xo = jax.random.normal(kx2, (N, Cin, 3, 4, 4), dtype=jnp.float32)
    mod5 = ConvT(Cin, 6, kernel_size=3, stride=2, padding=1, bias=True, key=k5)
    mod5.bias = 0.1 * jnp.ones((6,), jnp.float32)
    out5 = jax.block_until_ready(mod5(xo))
    ref5 = _reference_conv_transpose3d(xo, mod5.weight, mod5.bias,
                                       mod5.stride, mod5.padding)
    assert out5.shape == ref5.shape, (out5.shape, ref5.shape)
    assert jnp.allclose(out5, ref5, atol=1e-4, rtol=1e-4), float(
        jnp.max(jnp.abs(out5 - ref5)))

    print("KERNEL_OK")
</pallas_src>

<mosaic_0001>
module attributes {stable_mosaic.version = 11 : i64} {
  func.func @kernel(%arg0: i32, %arg1: i32, %arg2: i32, %arg3: memref<8x4xf32, #tpu.memory_space<vmem>>, %arg4: memref<1x4x256xf32, #tpu.memory_space<vmem>>, %arg5: memref<8x1xf32, #tpu.memory_space<vmem>>, %arg6: memref<1x8x256xf32, #tpu.memory_space<vmem>>) attributes {dimension_semantics = [#tpu.dimension_semantics<parallel>, #tpu.dimension_semantics<parallel>, #tpu.dimension_semantics<parallel>], iteration_bounds = array<i64: 2, 1, 1>, scalar_prefetch = 0 : i64, scratch_operands = 0 : i64, tpu.core_type = #tpu.core_type<tc>, window_params = [{transform_indices = @transform_0, window_bounds = array<i64: 8, 4>}, {transform_indices = @transform_1, window_bounds = array<i64: 1, 4, 256>}, {transform_indices = @transform_2, window_bounds = array<i64: 8, 1>}, {transform_indices = @transform_3, window_bounds = array<i64: 1, 8, 256>}]} {
    %c0 = arith.constant 0 : index
    %c0_0 = arith.constant 0 : index
    %0 = vector.load %arg3[%c0, %c0_0] : memref<8x4xf32, #tpu.memory_space<vmem>>, vector<8x4xf32>
    %c0_1 = arith.constant 0 : index
    %c0_2 = arith.constant 0 : index
    %c0_3 = arith.constant 0 : index
    %1 = vector.load %arg4[%c0_1, %c0_2, %c0_3] : memref<1x4x256xf32, #tpu.memory_space<vmem>>, vector<1x4x256xf32>
    %2 = vector.shape_cast %1 : vector<1x4x256xf32> to vector<4x256xf32>
    %cst = arith.constant dense<0.000000e+00> : vector<8x256xf32>
    %3 = tpu.matmul %0, %2, %cst {dimension_numbers = #tpu.dot_dimension_numbers<[1], [0], [0], [1], [0, 0, 1, 1], [], []>} : vector<8x4xf32>, vector<4x256xf32>, vector<8x256xf32> -> vector<8x256xf32>
    %c0_4 = arith.constant 0 : index
    %c0_5 = arith.constant 0 : index
    %4 = vector.load %arg5[%c0_4, %c0_5] : memref<8x1xf32, #tpu.memory_space<vmem>>, vector<8x1xf32>
    %5 = vector.broadcast %4 : vector<8x1xf32> to vector<8x256xf32>
    %6 = arith.addf %3, %5 : vector<8x256xf32>
    %c0_6 = arith.constant 0 : index
    %c0_7 = arith.constant 0 : index
    %c0_8 = arith.constant 0 : index
    %7 = vector.load %arg6[%c0_6, %c0_7, %c0_8] : memref<1x8x256xf32, #tpu.memory_space<vmem>>, vector<1x8x256xf32>
    %8 = vector.shape_cast %7 : vector<1x8x256xf32> to vector<8x256xf32>
    %9 = vector.shape_cast %6 : vector<8x256xf32> to vector<1x8x256xf32>
    tpu.vector_store %arg6[%c0_6, %c0_7, %c0_8], %9 {strides = array<i32>} : memref<1x8x256xf32, #tpu.memory_space<vmem>>, vector<1x8x256xf32>,
    return
  }
  func.func @transform_0(%arg0: i32, %arg1: i32, %arg2: i32) -> (i32, i32) {
    %c0_i32 = arith.constant 0 : i32
    %c0_i32_0 = arith.constant 0 : i32
    return %arg1, %c0_i32 : i32, i32
  }
  func.func @transform_1(%arg0: i32, %arg1: i32, %arg2: i32) -> (i32, i32, i32) {
    %c0_i32 = arith.constant 0 : i32
    %c0_i32_0 = arith.constant 0 : i32
    return %arg0, %c0_i32, %arg2 : i32, i32, i32
  }
  func.func @transform_2(%arg0: i32, %arg1: i32, %arg2: i32) -> (i32, i32) {
    %c0_i32 = arith.constant 0 : i32
    %c0_i32_0 = arith.constant 0 : i32
    return %arg1, %c0_i32 : i32, i32
  }
  func.func @transform_3(%arg0: i32, %arg1: i32, %arg2: i32) -> (i32, i32, i32) {
    %c0_i32 = arith.constant 0 : i32
    return %arg0, %arg1, %arg2 : i32, i32, i32
  }
}

</mosaic_0001>

<llo_original>
// kernel: tpu_custom_call.1
$region0: #{tpu_custom_call.1}
  #allocation0 [shape = 'u32[]', space=smem, size = 0x4, offset = 0x4, fixed_abs, tag = 'smem constant byte address 0x4 - core index']
  #allocation1 [shape = 'u32[72,128]{1,0:T(1,128)}', space=vmem, size = 0x9000, scoped, tag = 'internal scratch']
  %s0 = inlined_call_operand.vmem [shape: f32[8,4], index: 0, kind: input, shape index: {}]
  %s1 = inlined_call_operand.vmem [shape: f32[2,4,256], index: 1, kind: input, shape index: {}]
  %s2 = inlined_call_operand.vmem [shape: f32[8,1], index: 2, kind: input, shape index: {}]
  %s3 = inlined_call_operand.hbm [shape: f32[2,8,256], index: 3, kind: output, shape index: {}]
  %s4 = sld [smem:[#allocation0]]
  $region45: #{tpu_custom_call.1} parent=0
    _
  %s6 = ssub.s32 1, %s4
  %s7 = scalar_select 0, %s6, %s4
  $region1: #{tpu_custom_call.1} parent=0
    #allocation2 [shape = 'u8[16384]{0}', space=vmem, size = 0x4000, scoped, tag = 'output window, operand 0']
    #allocation3 [shape = 's32[2]{0}', space=sflag, size = 0x8, scoped, tag = 'scoped memory for tpu_custom_call.1']
    %8 = vsyncpa [#allocation3], 0
    %s9 = scalar_lea.sflag [#allocation3], 1
    %10 = vsyncpa %s9, 0
    loop: start=0, step=1, limit=4
    $region2: #{tpu_custom_call.1} parent=1 // loop_pre_header
      _
    $region3: #{tpu_custom_call.1} parent=1 // loop_header
      %s12 = sphi 0, %s16
      %p13 = scmp.ge.s32.totalorder %s12, 4
      %s19 = sphi 0, %s38
      %s20 = sphi 0, %s34
      %s21 = sphi 0, %s30
      %s22 = sphi 0, %s19
      %s23 = sphi 0, %s20
      %s24 = sphi 0, %s21
      %s25 = sphi 0, %s22
      %s26 = sphi 0, %s23
      %s27 = sphi 0, %s24
      %s41 = sphi 0, %s43
      %s44 = sphi 0, %s41
      %s45 = sphi 0, %s44
      %s61 = sphi 0, %s45
      %s69 = sphi 0, %s71
      %s72 = sphi 0, %s69
      %s73 = sphi 0, %s72
      %s89 = sphi 0, %s73
      %s95 = sphi 0, %s97
      %s98 = sphi 0, %s95
      %s99 = sphi 0, %s98
      %s115 = sphi 0, %s99
      %s125 = sphi 0, %s127
      %s128 = sphi 0, %s125
      %s129 = sphi 0, %s128
      %s145 = sphi 0, %s129
    $region4: #{tpu_custom_call.1} parent=1 // loop_header_branch
      %15 = sbr.rel (%p13) target = $region8
    $region5: #{tpu_custom_call.1} parent=1 // loop_body
      %s17 = ssub.s32 %s12, 1
      %s18 = ssub.s32 %s12, 2
      %s28 = sadd.s32 1, %s21
      %p29 = scmp.ge.s32.totalorder %s28, 1
      %s30 = scalar_select %p29, 0, %s28
      %s31 = sadd.s32 1, %s20
      %s32 = scalar_select %p29, %s31, %s20
      %p33 = scmp.ge.s32.totalorder %s32, 1
      %s34 = scalar_select %p33, 0, %s32
      %s35 = sadd.s32 1, %s19
      %s36 = scalar_select %p33, %s35, %s19
      %p37 = scmp.ge.s32.totalorder %s36, 2
      %s38 = scalar_select %p37, 0, %s36
      %s39 = ssub.s32 %s20, %s34
      %p40 = scmp.eq.s32.totalorder %s39, 0
      %s42 = sadd.s32 %s41, 1
      %s43 = scalar_select %p40, %s41, %s42
      %p46 = pneg %p40
      %p47 = scmp.eq.s32.totalorder %s12, 1
      %p48 = por %p46, %p47
      %p49 = scmp.ne.s32.totalorder %s41, %s44
      %p50 = scmp.eq.s32.totalorder %s12, 0
      %p51 = por %p49, %p50
      %p52 = scmp.ne.s32.totalorder %s41, %s44
      %p53 = scmp.eq.s32.totalorder %s17, 1
      %p54 = por %p52, %p53
      %p55 = scmp.ne.s32.totalorder %s44, %s45
      %p56 = scmp.eq.s32.totalorder %s17, 0
      %p57 = por %p55, %p56
      %p58 = scmp.ne.s32.totalorder %s44, %s45
      %p59 = scmp.eq.s32.totalorder %s18, 1
      %p60 = por %p58, %p59
      %p62 = scmp.ne.s32.totalorder %s45, %s61
      %p63 = scmp.eq.s32.totalorder %s18, 0
      %p64 = por %p62, %p63
      %s65 = ssub.s32 %s19, %s38
      %s66 = ssub.s32 %s21, %s30
      %s67 = sor.u32 %s65, %s66
      %p68 = scmp.eq.s32.totalorder %s67, 0
      %s70 = sadd.s32 %s69, 1
      %s71 = scalar_select %p68, %s69, %s70
      %p74 = pneg %p68
      %p75 = scmp.eq.s32.totalorder %s12, 1
      %p76 = por %p74, %p75
      %p77 = scmp.ne.s32.totalorder %s69, %s72
      %p78 = scmp.eq.s32.totalorder %s12, 0
      %p79 = por %p77, %p78
      %p80 = scmp.ne.s32.totalorder %s69, %s72
      %p81 = scmp.eq.s32.totalorder %s17, 1
      %p82 = por %p80, %p81
      %p83 = scmp.ne.s32.totalorder %s72, %s73
      %p84 = scmp.eq.s32.totalorder %s17, 0
      %p85 = por %p83, %p84
      %p86 = scmp.ne.s32.totalorder %s72, %s73
      %p87 = scmp.eq.s32.totalorder %s18, 1
      %p88 = por %p86, %p87
      %p90 = scmp.ne.s32.totalorder %s73, %s89
      %p91 = scmp.eq.s32.totalorder %s18, 0
      %p92 = por %p90, %p91
      %s93 = ssub.s32 %s20, %s34
      %p94 = scmp.eq.s32.totalorder %s93, 0
      %s96 = sadd.s32 %s95, 1
      %s97 = scalar_select %p94, %s95, %s96
      %p100 = pneg %p94
      %p101 = scmp.eq.s32.totalorder %s12, 1
      %p102 = por %p100, %p101
      %p103 = scmp.ne.s32.totalorder %s95, %s98
      %p104 = scmp.eq.s32.totalorder %s12, 0
      %p105 = por %p103, %p104
      %p106 = scmp.ne.s32.totalorder %s95, %s98
      %p107 = scmp.eq.s32.totalorder %s17, 1
      %p108 = por %p106, %p107
      %p109 = scmp.ne.s32.totalorder %s98, %s99
      %p110 = scmp.eq.s32.totalorder %s17, 0
      %p111 = por %p109, %p110
      %p112 = scmp.ne.s32.totalorder %s98, %s99
      %p113 = scmp.eq.s32.totalorder %s18, 1
      %p114 = por %p112, %p113
      %p116 = scmp.ne.s32.totalorder %s99, %s115
      %p117 = scmp.eq.s32.totalorder %s18, 0
      %p118 = por %p116, %p117
      %s119 = ssub.s32 %s19, %s38
      %s120 = ssub.s32 %s20, %s34
      %s121 = sor.u32 %s119, %s120
      %s122 = ssub.s32 %s21, %s30
      %s123 = sor.u32 %s121, %s122
      %p124 = scmp.eq.s32.totalorder %s123, 0
      %s126 = sadd.s32 %s125, 1
      %s127 = scalar_select %p124, %s125, %s126
      %p130 = pneg %p124
      %p131 = scmp.eq.s32.totalorder %s12, 1
      %p132 = por %p130, %p131
      %p133 = scmp.ne.s32.totalorder %s125, %s128
      %p134 = scmp.eq.s32.totalorder %s12, 0
      %p135 = por %p133, %p134
      %p136 = scmp.ne.s32.totalorder %s125, %s128
      %p137 = scmp.eq.s32.totalorder %s17, 1
      %p138 = por %p136, %p137
      %p139 = scmp.ne.s32.totalorder %s128, %s129
      %p140 = scmp.eq.s32.totalorder %s17, 0
      %p141 = por %p139, %p140
      %p142 = scmp.ne.s32.totalorder %s128, %s129
      %p143 = scmp.eq.s32.totalorder %s18, 1
      %p144 = por %p142, %p143
      %p146 = scmp.ne.s32.totalorder %s129, %s145
      %p147 = scmp.eq.s32.totalorder %s18, 0
      %p148 = por %p146, %p147
      %p149 = scmp.le.s32.totalorder 1, %s12
      %p150 = scmp.lt.s32.totalorder %s12, 3
      %p151 = pnand %p149, %p150
      %p152 = pneg %p151
      // Predicated region
      $region9: #{tpu_custom_call.1} parent=5 // pred_check
        _
      $region10: #{tpu_custom_call.1} parent=5 // pred_check_branch
        %154 = sbr.rel (%p151) target = $region12
      $region11: #{tpu_custom_call.1} parent=5 // pred_region
        %s155 = ssub.s32 %s12, 1
        // Predicated region
        $region13: #{tpu_custom_call.1} parent=11 // pred_check
          %p156 = pneg %p57
        $region14: #{tpu_custom_call.1} parent=11 // pred_check_branch
          %158 = sbr.rel (%p156) target = $region16
        $region15: #{tpu_custom_call.1} parent=11 // pred_region
          %p159 = scmp.lt.s32.totalorder %s23, 0
          %s160 = scalar_select %p159, %s23, 0
          %s161 = smul.addr %s160, 8
          %s162 = scalar_lea.vmem %s0, %s161
        $region16: #{tpu_custom_call.1} parent=11 // pred_fallthru
          _
        // Predicated region
        $region17: #{tpu_custom_call.1} parent=11 // pred_check
          %p163 = pneg %p111
        $region18: #{tpu_custom_call.1} parent=11 // pred_check_branch
          %165 = sbr.rel (%p163) target = $region20
        $region19: #{tpu_custom_call.1} parent=11 // pred_region
          %p166 = scmp.lt.s32.totalorder %s23, 0
          %s167 = scalar_select %p166, %s23, 0
          %s168 = smul.addr %s167, 8
          %s169 = scalar_lea.vmem %s2, %s168
        $region20: #{tpu_custom_call.1} parent=11 // pred_fallthru
          _
      $region12: #{tpu_custom_call.1} parent=5 // pred_fallthru
        _
      %p170 = scmp.lt.s32.totalorder %s12, 2
      // Predicated region
      $region21: #{tpu_custom_call.1} parent=5 // pred_check
        %p171 = pneg %p170
      $region22: #{tpu_custom_call.1} parent=5 // pred_check_branch
        %173 = sbr.rel (%p171) target = $region24
      $region23: #{tpu_custom_call.1} parent=5 // pred_region
        // Predicated region
        $region25: #{tpu_custom_call.1} parent=23 // pred_check
          %p174 = pneg %p79
        $region26: #{tpu_custom_call.1} parent=23 // pred_check_branch
          %176 = sbr.rel (%p174) target = $region28
        $region27: #{tpu_custom_call.1} parent=23 // pred_region
          %s177 = smul.u32 2, %s21
          %p178 = scmp.lt.s32.totalorder %s19, 1
          %s179 = scalar_select %p178, %s19, 1
          %p180 = scmp.lt.s32.totalorder %s177, 1
          %s181 = scalar_select %p180, %s177, 1
          %s182 = smul.addr %s179, 2
          %s183 = sadd.s32 %s181, %s182
          %s184 = smul.addr %s183, 4
          %s185 = scalar_lea.vmem %s1, %s184
          %s186 = smul.u32 2, %s21
        $region28: #{tpu_custom_call.1} parent=23 // pred_fallthru
          _
      $region24: #{tpu_custom_call.1} parent=5 // pred_fallthru
        _
      %p187 = scmp.le.s32.totalorder 1, %s12
      %p188 = scmp.lt.s32.totalorder %s12, 3
      %p189 = pnand %p187, %p188
      %p190 = pneg %p189
      // Predicated region
      $region29: #{tpu_custom_call.1} parent=5 // pred_check
        _
      $region30: #{tpu_custom_call.1} parent=5 // pred_check_branch
        %192 = sbr.rel (%p189) target = $region32
      $region31: #{tpu_custom_call.1} parent=5 // pred_region
        %s193 = ssub.s32 %s12, 1
        %p194 = scmp.lt.s32.totalorder %s23, 0
        %s195 = scalar_select %p194, %s23, 0
        %s196 = smul.addr %s195, 8
        %s197 = scalar_lea.vmem %s0, %s196
        %p198 = pneg %p57
        %p199 = pneg %p54
        %s200 = smul.u32 2, %s24
        %p201 = scmp.lt.s32.totalorder %s22, 1
        %s202 = scalar_select %p201, %s22, 1
        %p203 = scmp.lt.s32.totalorder %s200, 1
        %s204 = scalar_select %p203, %s200, 1
        %s205 = smul.addr %s202, 2
        %s206 = sadd.s32 %s204, %s205
        %s207 = smul.addr %s206, 4
        %s208 = scalar_lea.vmem %s1, %s207
        %p209 = pneg %p85
        %p210 = pneg %p82
        %p211 = scmp.lt.s32.totalorder %s23, 0
        %s212 = scalar_select %p211, %s23, 0
        %s213 = smul.addr %s212, 8
        %s214 = scalar_lea.vmem %s2, %s213
        %p215 = pneg %p111
        %p216 = pneg %p108
        %p217 = pneg %p141
        %p218 = pneg %p138
        %s219 = sand.u32 %s128, 1
        %s220 = scalar_lea.sflag [#allocation3], %s219
        %s221 = sand.u32 %s128, 1
        %s222 = smul.addr %s221, 16
        %s223 = scalar_lea.vmem [#allocation2], %s222
        %p224 = scmp.lt.s32.totalorder %s23, 0
        %s225 = scalar_select %p224, %s23, 0
        %s226 = smul.addr %s225, 8
        %s227 = scalar_lea.vmem %s0, %s226
        %s228 = smul.u32 2, %s24
        %p229 = scmp.lt.s32.totalorder %s22, 1
        %s230 = scalar_select %p229, %s22, 1
        %p231 = scmp.lt.s32.totalorder %s228, 1
        %s232 = scalar_select %p231, %s228, 1
        %s233 = smul.addr %s230, 2
        %s234 = sadd.s32 %s232, %s233
        %s235 = smul.addr %s234, 4
        %s236 = scalar_lea.vmem %s1, %s235
        %s237 = smul.u32 2, %s24
        %p238 = scmp.lt.s32.totalorder %s23, 0
        %s239 = scalar_select %p238, %s23, 0
        %s240 = smul.addr %s239, 8
        %s241 = scalar_lea.vmem %s2, %s240
        %s242 = smul.u32 2, %s24
        %v243 = vld [vmem:[%s227] sm:$0xff]
        %v244 = vld [vmem:[%s236] sm:$0xff]
        %v245 = vld [vmem:[%s241] sm:$0xff]
        %247 = vset.pattern.permute.xlu0 0
        %248 = vperm.xlu0 %247, %v245
        %v249 = vpop.permute.xlu0 %248
        %252 = vst [vmem:[#allocation1] ss:$2 sm:$0xff] %v244
        %v253 = vld.sshfl [vmem:[#allocation1] sm:$0xff pattern:$0x75316420]
        %v254 = vld.sshfl [vmem:[#allocation1 + $0x8] sm:$0xff pattern:$0x75316420]
        %vm255 = vcmask 31744
        %v257 = vsel %vm255, %v243, 0
        %vm259 = vcmask 1043456
        %v260 = vsel %vm259, %v253, 0
        %v262 = vsel %vm259, %v254, 0
        %264 = vmatpush.msra.mxu0 0.0
        %265 = vmatpush.msra.mxu0 0.0
        %266 = vmatpush.msra.mxu0 0.0
        %267 = vmatpush.msra.mxu0 0.0
        %268 = vmatpush.msra.mxu0 0.0
        %269 = vmatpush.msra.mxu0 0.0
        %270 = vmatpush.msra.mxu0 0.0
        %271 = vmatpush.msra.mxu0 0.0
        %272 = vmatpush.msra.mxu0 0.0
        %273 = vmatpush.msra.mxu0 0.0
        %274 = vmatpush.msra.mxu0 0.0
        %275 = vmatpush.msra.mxu0 0.0
        %276 = vmatpush.msra.mxu0 0.0
        %277 = vmatpush.msra.mxu0 0.0
        %278 = vmatpush.msra.mxu0 0.0
        %279 = vmatpush.msra.mxu0 %v260
        %280 = vmatmul.f32.gmra.mxu0 %v257
        %v281 = vpop.f32.mrf.mxu0
        %v282 = vadd.f32 %v249, %v281
        %283 = vdwg.mxu0
        %284 = vmatpush.msra.mxu0 0.0
        %285 = vmatpush.msra.mxu0 0.0
        %286 = vmatpush.msra.mxu0 0.0
        %287 = vmatpush.msra.mxu0 0.0
        %288 = vmatpush.msra.mxu0 0.0
        %289 = vmatpush.msra.mxu0 0.0
        %290 = vmatpush.msra.mxu0 0.0
        %291 = vmatpush.msra.mxu0 0.0
        %292 = vmatpush.msra.mxu0 0.0
        %293 = vmatpush.msra.mxu0 0.0
        %294 = vmatpush.msra.mxu0 0.0
        %295 = vmatpush.msra.mxu0 0.0
        %296 = vmatpush.msra.mxu0 0.0
        %297 = vmatpush.msra.mxu0 0.0
        %298 = vmatpush.msra.mxu0 0.0
        %299 = vmatpush.msra.mxu0 %v262
        %300 = vmatmul.f32.gmra.mxu0 %v257
        %v301 = vpop.f32.mrf.mxu0
        %v302 = vadd.f32 %v249, %v301
        %303 = vdwg.mxu0
        %304 = vst [vmem:[%s223] sm:$0xff] %v282
        %305 = vst [vmem:[%s223 + $0x8] sm:$0xff] %v302
        %s306 = sand.u32 %s128, 1
        %s307 = scalar_lea.sflag [#allocation3], %s306
        %s308 = sand.u32 %s128, 1
        %s309 = smul.addr %s308, 16
        %s310 = scalar_lea.vmem [#allocation2], %s309
        // Predicated region
        $region33: #{tpu_custom_call.1} parent=31 // pred_check
          %p311 = pneg %p138
        $region34: #{tpu_custom_call.1} parent=31 // pred_check_branch
          %313 = sbr.rel (%p311) target = $region36
        $region35: #{tpu_custom_call.1} parent=31 // pred_region
          %s314 = smul.u32 2, %s24
          %316 = vsyncadd %s307, 0
          %s317 = smul.addr %s23, 2
          %s318 = sadd.s32 %s314, %s317
          %s319 = smul.addr %s22, 2
          %s320 = sadd.s32 %s318, %s319
          %s321 = smul.addr %s320, 8
          %s322 = scalar_lea.hbm %s3, %s321
          %s324 = sshll.u32 %s310, 4
          %s325 = int_to_ptr.vmem [resolvable:$true] %s324
          %s326 = sshll.u32 %s322, 4
          %s327 = int_to_ptr.hbm [resolvable:$true] %s326
          %329 = dma.vmem_to_hbm [thread:$0]  %s325, 256, %s327, %s307
        $region36: #{tpu_custom_call.1} parent=31 // pred_fallthru
          _
      $region32: #{tpu_custom_call.1} parent=5 // pred_fallthru
        _
      %p330 = scmp.le.s32.totalorder 2, %s12
      // Predicated region
      $region37: #{tpu_custom_call.1} parent=5 // pred_check
        %p331 = pneg %p330
      $region38: #{tpu_custom_call.1} parent=5 // pred_check_branch
        %333 = sbr.rel (%p331) target = $region40
      $region39: #{tpu_custom_call.1} parent=5 // pred_region
        %s334 = ssub.s32 %s12, 2
        // Predicated region
        $region41: #{tpu_custom_call.1} parent=39 // pred_check
          %p335 = pneg %p144
        $region42: #{tpu_custom_call.1} parent=39 // pred_check_branch
          %337 = sbr.rel (%p335) target = $region44
        $region43: #{tpu_custom_call.1} parent=39 // pred_region
          %s338 = sand.u32 %s129, 1
          %s339 = scalar_lea.sflag [#allocation3], %s338
          %s340 = sand.u32 %s129, 1
          %s341 = smul.addr %s340, 16
          %s342 = scalar_lea.vmem [#allocation2], %s341
          %344 = dma.done %s339, 256
        $region44: #{tpu_custom_call.1} parent=39 // pred_fallthru
          _
      $region40: #{tpu_custom_call.1} parent=5 // pred_fallthru
        _
    $region6: #{tpu_custom_call.1} parent=1 // loop_footer
      %s16 = sadd.s32 1, %s12
    $region7: #{tpu_custom_call.1} parent=1 // loop_footer_branch
      %11 = sbr.rel target = $region3
    $region8: #{tpu_custom_call.1} parent=1 // loop_exit
      _
    %345 = vsyncpa [#allocation3], 1
    %s346 = scalar_lea.sflag [#allocation3], 1
    %347 = vsyncpa %s346, 1

</llo_original>
